<compile_context>
chip_gen: v7x
topology: tpu7x:2x2x1
jax: 0.10.0
libtpu: 0.0.40
codegen_flags: <defaults>
</compile_context>

<pallas_src>
import jax
import jax.numpy as jnp
from jax.experimental import pallas as pl
from jax.experimental.pallas import tpu as pltpu


def _smape_partial_kernel(f_ref, t_ref, m_ref, out_ref):
    """One grid step: masked sMAPE ratio over a (br, C) block, row-reduced."""
    f = f_ref[...].astype(jnp.float32)
    tgt = t_ref[...].astype(jnp.float32)
    msk = m_ref[...].astype(jnp.float32)

    num = jnp.abs(f - tgt)
    den = jnp.abs(f) + jnp.abs(tgt)
    # divide_no_nan: num, den >= 0, so NaN (0/0) and +inf (x/0) <=> den == 0.
    ratio = jnp.where(den == 0.0, jnp.float32(0.0), num / den)

    # Partial sum for this tile only; reduce across the sublane (row) axis so
    # the work is mostly vreg-wise VPU adds hidden under the streaming DMA.
    out_ref[0] = jnp.sum(ratio * msk, axis=0, keepdims=True)  # (1, C)


def _round_up(x, m):
    return -(-x // m) * m


def _to_slab(x, rows, cols):
    """Flatten row-major and zero-pad into a lane-dense (rows, cols) slab."""
    flat = x.reshape(-1)
    total = rows * cols
    if flat.shape[0] != total:
        flat = jnp.pad(flat, (0, total - flat.shape[0]))
    return flat.reshape(rows, cols)


def smape_loss(insample, freq, forecast, target, mask, *,
               block_rows=256, lane_width=1024):
    """Pallas sMAPE loss. forecast/target/mask: (batch, time). Returns scalar."""
    del insample, freq  # unused by the PyTorch forward
    B, T = forecast.shape
    assert target.shape == (B, T) and mask.shape == (B, T)
    n_total = B * T

    C = lane_width
    assert C % 128 == 0, "lane_width must be a multiple of 128"

    rows = _round_up(max(pl.cdiv(n_total, C), 1), 8)   # sublane-aligned rows
    br = min(_round_up(block_rows, 8), rows)           # block rows (mult of 8)
    rows = _round_up(rows, br)                         # pad to whole tiles
    n_tiles = rows // br

    f_slab = _to_slab(forecast, rows, C)
    t_slab = _to_slab(target, rows, C)
    m_slab = _to_slab(mask, rows, C)

    partials = pl.pallas_call(
        _smape_partial_kernel,
        out_shape=jax.ShapeDtypeStruct((n_tiles, 1, C), jnp.float32),
        grid_spec=pltpu.PrefetchScalarGridSpec(
            num_scalar_prefetch=0,
            grid=(n_tiles,),
            in_specs=[
                pl.BlockSpec((br, C), lambda i: (i, 0)),
                pl.BlockSpec((br, C), lambda i: (i, 0)),
                pl.BlockSpec((br, C), lambda i: (i, 0)),
            ],
            out_specs=pl.BlockSpec((1, 1, C), lambda i: (i, 0, 0)),
        ),
        compiler_params=pltpu.CompilerParams(
            dimension_semantics=("parallel",),
        ),
    )(f_slab, t_slab, m_slab)

    return 200.0 * jnp.sum(partials) / jnp.float32(n_total)


def _smape_ref(forecast, target, mask):
    num = jnp.abs(forecast - target)
    den = jnp.abs(forecast) + jnp.abs(target)
    ratio = jnp.where(den == 0.0, 0.0, num / den)
    return 200.0 * jnp.mean(ratio * mask)


if __name__ == "__main__":
    key = jax.random.PRNGKey(0)
    k1, k2, k3, k4 = jax.random.split(key, 4)

    # --- test 1: small, single tile ---
    B, T = 8, 256
    insample = jax.random.normal(k1, (B, 32), dtype=jnp.float32)  # unused
    freq = 1                                                       # unused
    forecast = jax.random.normal(k2, (B, T), dtype=jnp.float32)
    target = jax.random.normal(k3, (B, T), dtype=jnp.float32)
    # include exact zeros in both to exercise the divide_no_nan path
    target = target.at[:, :4].set(0.0)
    forecast = forecast.at[:, :4].set(0.0)
    mask = (jax.random.uniform(k4, (B, T)) > 0.2).astype(jnp.float32)

    loss = smape_loss(insample, freq, forecast, target, mask)
    loss = jax.block_until_ready(loss)
    ref = _smape_ref(forecast, target, mask)
    assert jnp.allclose(loss, ref, rtol=1e-5, atol=1e-5), (loss, ref)

    # --- test 2: multiple parallel tiles + padding path ---
    k5, k6, k7 = jax.random.split(k4, 3)
    B2, T2 = 16, 384
    forecast2 = jax.random.normal(k5, (B2, T2), dtype=jnp.float32)
    target2 = jax.random.normal(k6, (B2, T2), dtype=jnp.float32)
    forecast2 = forecast2.at[:, :3].set(0.0)
    target2 = target2.at[:, :3].set(0.0)
    mask2 = (jax.random.uniform(k7, (B2, T2)) > 0.5).astype(jnp.float32)

    loss2 = smape_loss(insample, freq, forecast2, target2, mask2,
                       block_rows=16, lane_width=256)
    loss2 = jax.block_until_ready(loss2)
    ref2 = _smape_ref(forecast2, target2, mask2)
    assert jnp.allclose(loss2, ref2, rtol=1e-5, atol=1e-5), (loss2, ref2)

    print("KERNEL_OK")
</pallas_src>

<mosaic_0001>
module attributes {stable_mosaic.version = 11 : i64} {
  func.func @_smape_partial_kernel(%arg0: i32, %arg1: memref<8x1024xf32, #tpu.memory_space<vmem>>, %arg2: memref<8x1024xf32, #tpu.memory_space<vmem>>, %arg3: memref<8x1024xf32, #tpu.memory_space<vmem>>, %arg4: memref<1x1x1024xf32, #tpu.memory_space<vmem>>) attributes {dimension_semantics = [#tpu.dimension_semantics<parallel>], iteration_bounds = array<i64: 1>, scalar_prefetch = 0 : i64, scratch_operands = 0 : i64, tpu.core_type = #tpu.core_type<tc>, window_params = [{transform_indices = @transform_0, window_bounds = array<i64: 8, 1024>}, {transform_indices = @transform_1, window_bounds = array<i64: 8, 1024>}, {transform_indices = @transform_2, window_bounds = array<i64: 8, 1024>}, {transform_indices = @transform_3, window_bounds = array<i64: 1, 1, 1024>}]} {
    %c0 = arith.constant 0 : index
    %c0_0 = arith.constant 0 : index
    %0 = vector.load %arg1[%c0, %c0_0] : memref<8x1024xf32, #tpu.memory_space<vmem>>, vector<8x1024xf32>
    %c0_1 = arith.constant 0 : index
    %c0_2 = arith.constant 0 : index
    %1 = vector.load %arg2[%c0_1, %c0_2] : memref<8x1024xf32, #tpu.memory_space<vmem>>, vector<8x1024xf32>
    %c0_3 = arith.constant 0 : index
    %c0_4 = arith.constant 0 : index
    %2 = vector.load %arg3[%c0_3, %c0_4] : memref<8x1024xf32, #tpu.memory_space<vmem>>, vector<8x1024xf32>
    %3 = arith.subf %0, %1 : vector<8x1024xf32>
    %4 = math.absf %3 : vector<8x1024xf32>
    %5 = math.absf %0 : vector<8x1024xf32>
    %6 = math.absf %1 : vector<8x1024xf32>
    %7 = arith.addf %5, %6 : vector<8x1024xf32>
    %cst = arith.constant 0.000000e+00 : f32
    %8 = vector.broadcast %cst : f32 to vector<8x1024xf32>
    %9 = arith.cmpf oeq, %7, %8 : vector<8x1024xf32>
    %10 = arith.divf %4, %7 : vector<8x1024xf32>
    %cst_5 = arith.constant 0.000000e+00 : f32
    %11 = vector.broadcast %cst_5 : f32 to vector<8x1024xf32>
    %12 = arith.select %9, %11, %10 : vector<8x1024xi1>, vector<8x1024xf32>
    %13 = arith.mulf %12, %2 : vector<8x1024xf32>
    %cst_6 = arith.constant dense<0.000000e+00> : vector<1024xf32>
    %14 = vector.multi_reduction <add>, %13, %cst_6 [0] : vector<8x1024xf32> to vector<1024xf32>
    %15 = vector.shape_cast %14 : vector<1024xf32> to vector<1x1024xf32>
    %c0_7 = arith.constant 0 : index
    %c0_8 = arith.constant 0 : index
    %c0_9 = arith.constant 0 : index
    %16 = vector.load %arg4[%c0_7, %c0_8, %c0_9] : memref<1x1x1024xf32, #tpu.memory_space<vmem>>, vector<1x1x1024xf32>
    %17 = vector.shape_cast %16 : vector<1x1x1024xf32> to vector<1x1024xf32>
    %18 = vector.shape_cast %15 : vector<1x1024xf32> to vector<1x1x1024xf32>
    tpu.vector_store %arg4[%c0_7, %c0_8, %c0_9], %18 {strides = array<i32>} : memref<1x1x1024xf32, #tpu.memory_space<vmem>>, vector<1x1x1024xf32>,
    return
  }
  func.func @transform_0(%arg0: i32) -> (i32, i32) {
    %c0_i32 = arith.constant 0 : i32
    %c0_i32_0 = arith.constant 0 : i32
    return %arg0, %c0_i32 : i32, i32
  }
  func.func @transform_1(%arg0: i32) -> (i32, i32) {
    %c0_i32 = arith.constant 0 : i32
    %c0_i32_0 = arith.constant 0 : i32
    return %arg0, %c0_i32 : i32, i32
  }
  func.func @transform_2(%arg0: i32) -> (i32, i32) {
    %c0_i32 = arith.constant 0 : i32
    %c0_i32_0 = arith.constant 0 : i32
    return %arg0, %c0_i32 : i32, i32
  }
  func.func @transform_3(%arg0: i32) -> (i32, i32, i32) {
    %c0_i32 = arith.constant 0 : i32
    %c0_i32_0 = arith.constant 0 : i32
    %c0_i32_1 = arith.constant 0 : i32
    return %arg0, %c0_i32, %c0_i32_0 : i32, i32, i32
  }
}

</mosaic_0001>

<llo_original>
// kernel: tpu_custom_call.1
$region0: #{tpu_custom_call.1}
  #allocation0 [shape = 'u32[]', space=smem, size = 0x4, offset = 0x4, fixed_abs, tag = 'smem constant byte address 0x4 - core index']
  #allocation1 [shape = 'u32[144,128]{1,0:T(1,128)}', space=vmem, size = 0x12000, scoped, tag = 'internal scratch']
  %s0 = inlined_call_operand.hbm [shape: f32[8,1024], index: 0, kind: input, shape index: {}]
  %s1 = inlined_call_operand.hbm [shape: f32[8,1024], index: 1, kind: input, shape index: {}]
  %s2 = inlined_call_operand.hbm [shape: f32[8,1024], index: 2, kind: input, shape index: {}]
  %s3 = inlined_call_operand.hbm [shape: f32[1,1,1024], index: 3, kind: output, shape index: {}]
  %s4 = sld [smem:[#allocation0]]
  $region34: #{tpu_custom_call.1} parent=0
    _
  %s6 = ssub.s32 1, %s4
  %s7 = scalar_select 0, %s6, %s4
  $region1: #{tpu_custom_call.1} parent=0
    #allocation2 [shape = 'u8[32768]{0}', space=vmem, size = 0x8000, scoped, tag = 'input window, operand 0, single buffered']
    #allocation3 [shape = 's32[1]{0}', space=sflag, size = 0x4, scoped, tag = 'scoped memory for tpu_custom_call.1']
    #allocation4 [shape = 's32[1]{0}', space=sflag, size = 0x4, scoped, tag = 'scoped memory for tpu_custom_call.1']
    #allocation5 [shape = 'u8[32768]{0}', space=vmem, size = 0x8000, scoped, tag = 'input window, operand 1, single buffered']
    #allocation6 [shape = 's32[1]{0}', space=sflag, size = 0x4, scoped, tag = 'scoped memory for tpu_custom_call.1']
    #allocation7 [shape = 'u8[32768]{0}', space=vmem, size = 0x8000, scoped, tag = 'input window, operand 2, single buffered']
    #allocation8 [shape = 'u8[4096]{0}', space=vmem, size = 0x1000, scoped, tag = 'output window, operand 0, single buffered']
    %8 = vsyncpa [#allocation3], 0
    %9 = vsyncpa [#allocation6], 0
    %10 = vsyncpa [#allocation4], 0
    // Predicated region
    $region2: #{tpu_custom_call.1} parent=1 // pred_check
      _
    $region3: #{tpu_custom_call.1} parent=1 // pred_check_branch
      %12 = sbr.rel (0) target = $region5
    $region4: #{tpu_custom_call.1} parent=1 // pred_region
      %s14 = ssub.s32 1024, 1024
      %15 = vsyncadd [#allocation3], %s14
      %s17 = sshll.u32 [#allocation2], 4
      %s18 = int_to_ptr.vmem [resolvable:$true] %s17
      %20 = dma.hbm_to_vmem [thread:$0]  %s0, 1024, %s18, [#allocation3]
    $region5: #{tpu_custom_call.1} parent=1 // pred_fallthru
      _
    // Predicated region
    $region6: #{tpu_custom_call.1} parent=1 // pred_check
      _
    $region7: #{tpu_custom_call.1} parent=1 // pred_check_branch
      %22 = sbr.rel (0) target = $region9
    $region8: #{tpu_custom_call.1} parent=1 // pred_region
      %s24 = ssub.s32 1024, 1024
      %25 = vsyncadd [#allocation6], %s24
      %s27 = sshll.u32 [#allocation5], 4
      %s28 = int_to_ptr.vmem [resolvable:$true] %s27
      %30 = dma.hbm_to_vmem [thread:$0]  %s1, 1024, %s28, [#allocation6]
    $region9: #{tpu_custom_call.1} parent=1 // pred_fallthru
      _
    // Predicated region
    $region10: #{tpu_custom_call.1} parent=1 // pred_check
      _
    $region11: #{tpu_custom_call.1} parent=1 // pred_check_branch
      %32 = sbr.rel (0) target = $region13
    $region12: #{tpu_custom_call.1} parent=1 // pred_region
      %s34 = ssub.s32 1024, 1024
      %35 = vsyncadd [#allocation6], %s34
      %s37 = sshll.u32 [#allocation7], 4
      %s38 = int_to_ptr.vmem [resolvable:$true] %s37
      %40 = dma.hbm_to_vmem [thread:$0]  %s2, 1024, %s38, [#allocation6]
    $region13: #{tpu_custom_call.1} parent=1 // pred_fallthru
      _
    // Predicated region
    $region14: #{tpu_custom_call.1} parent=1 // pred_check
      _
    $region15: #{tpu_custom_call.1} parent=1 // pred_check_branch
      %42 = sbr.rel (0) target = $region17
    $region16: #{tpu_custom_call.1} parent=1 // pred_region
      %43 = dma.done [#allocation3], 1024
    $region17: #{tpu_custom_call.1} parent=1 // pred_fallthru
      _
    // Predicated region
    $region18: #{tpu_custom_call.1} parent=1 // pred_check
      _
    $region19: #{tpu_custom_call.1} parent=1 // pred_check_branch
      %45 = sbr.rel (0) target = $region21
    $region20: #{tpu_custom_call.1} parent=1 // pred_region
      %46 = dma.done [#allocation6], 1024
    $region21: #{tpu_custom_call.1} parent=1 // pred_fallthru
      _
    // Predicated region
    $region22: #{tpu_custom_call.1} parent=1 // pred_check
      _
    $region23: #{tpu_custom_call.1} parent=1 // pred_check_branch
      %48 = sbr.rel (0) target = $region25
    $region24: #{tpu_custom_call.1} parent=1 // pred_region
      %49 = dma.done [#allocation6], 1024
    $region25: #{tpu_custom_call.1} parent=1 // pred_fallthru
      _
    %v50 = vld [vmem:[#allocation2] sm:$0xff]
    %v51 = vld [vmem:[#allocation2 + $0x8] sm:$0xff]
    %v52 = vld [vmem:[#allocation2 + $0x10] sm:$0xff]
    %v53 = vld [vmem:[#allocation2 + $0x18] sm:$0xff]
    %v54 = vld [vmem:[#allocation2 + $0x20] sm:$0xff]
    %v55 = vld [vmem:[#allocation2 + $0x28] sm:$0xff]
    %v56 = vld [vmem:[#allocation2 + $0x30] sm:$0xff]
    %v57 = vld [vmem:[#allocation2 + $0x38] sm:$0xff]
    %v58 = vld [vmem:[#allocation5] sm:$0xff]
    %v59 = vld [vmem:[#allocation5 + $0x8] sm:$0xff]
    %v60 = vld [vmem:[#allocation5 + $0x10] sm:$0xff]
    %v61 = vld [vmem:[#allocation5 + $0x18] sm:$0xff]
    %v62 = vld [vmem:[#allocation5 + $0x20] sm:$0xff]
    %v63 = vld [vmem:[#allocation5 + $0x28] sm:$0xff]
    %v64 = vld [vmem:[#allocation5 + $0x30] sm:$0xff]
    %v65 = vld [vmem:[#allocation5 + $0x38] sm:$0xff]
    %v66 = vld [vmem:[#allocation7] sm:$0xff]
    %v67 = vld [vmem:[#allocation7 + $0x8] sm:$0xff]
    %v68 = vld [vmem:[#allocation7 + $0x10] sm:$0xff]
    %v69 = vld [vmem:[#allocation7 + $0x18] sm:$0xff]
    %v70 = vld [vmem:[#allocation7 + $0x20] sm:$0xff]
    %v71 = vld [vmem:[#allocation7 + $0x28] sm:$0xff]
    %v72 = vld [vmem:[#allocation7 + $0x30] sm:$0xff]
    %v73 = vld [vmem:[#allocation7 + $0x38] sm:$0xff]
    %v74 = vsub.f32 %v50, %v58
    %v75 = vsub.f32 %v51, %v59
    %v76 = vsub.f32 %v52, %v60
    %v77 = vsub.f32 %v53, %v61
    %v78 = vsub.f32 %v54, %v62
    %v79 = vsub.f32 %v55, %v63
    %v80 = vsub.f32 %v56, %v64
    %v81 = vsub.f32 %v57, %v65
    %v82 = vand.u32 2147483647, %v74
    %v83 = vand.u32 2147483647, %v75
    %v84 = vand.u32 2147483647, %v76
    %v85 = vand.u32 2147483647, %v77
    %v86 = vand.u32 2147483647, %v78
    %v87 = vand.u32 2147483647, %v79
    %v88 = vand.u32 2147483647, %v80
    %v89 = vand.u32 2147483647, %v81
    %v90 = vand.u32 2147483647, %v50
    %v91 = vand.u32 2147483647, %v51
    %v92 = vand.u32 2147483647, %v52
    %v93 = vand.u32 2147483647, %v53
    %v94 = vand.u32 2147483647, %v54
    %v95 = vand.u32 2147483647, %v55
    %v96 = vand.u32 2147483647, %v56
    %v97 = vand.u32 2147483647, %v57
    %v98 = vand.u32 2147483647, %v58
    %v99 = vand.u32 2147483647, %v59
    %v100 = vand.u32 2147483647, %v60
    %v101 = vand.u32 2147483647, %v61
    %v102 = vand.u32 2147483647, %v62
    %v103 = vand.u32 2147483647, %v63
    %v104 = vand.u32 2147483647, %v64
    %v105 = vand.u32 2147483647, %v65
    %v106 = vadd.f32 %v90, %v98
    %v107 = vadd.f32 %v91, %v99
    %v108 = vadd.f32 %v92, %v100
    %v109 = vadd.f32 %v93, %v101
    %v110 = vadd.f32 %v94, %v102
    %v111 = vadd.f32 %v95, %v103
    %v112 = vadd.f32 %v96, %v104
    %v113 = vadd.f32 %v97, %v105
    %vm114 = vcmp.eq.f32.partialorder %v106, 0.0
    %vm115 = vcmp.eq.f32.partialorder %v107, 0.0
    %vm116 = vcmp.eq.f32.partialorder %v108, 0.0
    %vm117 = vcmp.eq.f32.partialorder %v109, 0.0
    %vm118 = vcmp.eq.f32.partialorder %v110, 0.0
    %vm119 = vcmp.eq.f32.partialorder %v111, 0.0
    %vm120 = vcmp.eq.f32.partialorder %v112, 0.0
    %vm121 = vcmp.eq.f32.partialorder %v113, 0.0
    %v122 = vrcp.pop %v106
    %v123 = vmul.f32 %v82, %v122
    %v124 = vrcp.pop %v107
    %v125 = vmul.f32 %v83, %v124
    %v126 = vrcp.pop %v108
    %v127 = vmul.f32 %v84, %v126
    %v128 = vrcp.pop %v109
    %v129 = vmul.f32 %v85, %v128
    %v130 = vrcp.pop %v110
    %v131 = vmul.f32 %v86, %v130
    %v132 = vrcp.pop %v111
    %v133 = vmul.f32 %v87, %v132
    %v134 = vrcp.pop %v112
    %v135 = vmul.f32 %v88, %v134
    %v136 = vrcp.pop %v113
    %v137 = vmul.f32 %v89, %v136
    %v138 = vsel %vm114, 0.0, %v123
    %v139 = vsel %vm115, 0.0, %v125
    %v140 = vsel %vm116, 0.0, %v127
    %v141 = vsel %vm117, 0.0, %v129
    %v142 = vsel %vm118, 0.0, %v131
    %v143 = vsel %vm119, 0.0, %v133
    %v144 = vsel %vm120, 0.0, %v135
    %v145 = vsel %vm121, 0.0, %v137
    %v146 = vmul.f32 %v138, %v66
    %v147 = vmul.f32 %v139, %v67
    %v148 = vmul.f32 %v140, %v68
    %v149 = vmul.f32 %v141, %v69
    %v150 = vmul.f32 %v142, %v70
    %v151 = vmul.f32 %v143, %v71
    %v152 = vmul.f32 %v144, %v72
    %v153 = vmul.f32 %v145, %v73
    %v154 = vrot.slane %v146, 4
    %v155 = vadd.f32 %v146, %v154
    %v156 = vrot.slane %v155, 2
    %v157 = vadd.f32 %v155, %v156
    %v158 = vrot.slane %v157, 1
    %v159 = vadd.f32 %v157, %v158
    %v160 = vrot.slane %v147, 4
    %v161 = vadd.f32 %v147, %v160
    %v162 = vrot.slane %v161, 2
    %v163 = vadd.f32 %v161, %v162
    %v164 = vrot.slane %v163, 1
    %v165 = vadd.f32 %v163, %v164
    %v166 = vrot.slane %v148, 4
    %v167 = vadd.f32 %v148, %v166
    %v168 = vrot.slane %v167, 2
    %v169 = vadd.f32 %v167, %v168
    %v170 = vrot.slane %v169, 1
    %v171 = vadd.f32 %v169, %v170
    %v172 = vrot.slane %v149, 4
    %v173 = vadd.f32 %v149, %v172
    %v174 = vrot.slane %v173, 2
    %v175 = vadd.f32 %v173, %v174
    %v176 = vrot.slane %v175, 1
    %v177 = vadd.f32 %v175, %v176
    %v178 = vrot.slane %v150, 4
    %v179 = vadd.f32 %v150, %v178
    %v180 = vrot.slane %v179, 2
    %v181 = vadd.f32 %v179, %v180
    %v182 = vrot.slane %v181, 1
    %v183 = vadd.f32 %v181, %v182
    %v184 = vrot.slane %v151, 4
    %v185 = vadd.f32 %v151, %v184
    %v186 = vrot.slane %v185, 2
    %v187 = vadd.f32 %v185, %v186
    %v188 = vrot.slane %v187, 1
    %v189 = vadd.f32 %v187, %v188
    %v190 = vrot.slane %v152, 4
    %v191 = vadd.f32 %v152, %v190
    %v192 = vrot.slane %v191, 2
    %v193 = vadd.f32 %v191, %v192
    %v194 = vrot.slane %v193, 1
    %v195 = vadd.f32 %v193, %v194
    %v196 = vrot.slane %v153, 4
    %v197 = vadd.f32 %v153, %v196
    %v198 = vrot.slane %v197, 2
    %v199 = vadd.f32 %v197, %v198
    %v200 = vrot.slane %v199, 1
    %v201 = vadd.f32 %v199, %v200
    %v210 = vcombine.low %v159, %v165
    %v211 = vcombine.low %v171, %v177
    %v212 = vcombine.low %v183, %v189
    %v213 = vcombine.low %v195, %v201
    %v215 = vunpack.c.l.s4 1966171168
    %v216 = vunpack.c.0.s8 %v215
    %v217 = vlaneseq
    %v218 = vshrl.u32 %v217, 7
    %v219 = vsub.s32 %v216, %v218
    %v220 = vrot.slane %v210, %v219
    %v222 = vunpack.c.l.s4 1966171168
    %v223 = vunpack.c.0.s8 %v222
    %v224 = vlaneseq
    %v225 = vshrl.u32 %v224, 7
    %v226 = vsub.s32 %v223, %v225
    %v227 = vrot.slane %v211, %v226
    %v229 = vunpack.c.l.s4 1966171168
    %v230 = vunpack.c.0.s8 %v229
    %v231 = vlaneseq
    %v232 = vshrl.u32 %v231, 7
    %v233 = vsub.s32 %v230, %v232
    %v234 = vrot.slane %v212, %v233
    %v236 = vunpack.c.l.s4 1966171168
    %v237 = vunpack.c.0.s8 %v236
    %v238 = vlaneseq
    %v239 = vshrl.u32 %v238, 7
    %v240 = vsub.s32 %v237, %v239
    %v241 = vrot.slane %v213, %v240
    %v242 = vcombine.low %v220, %v227
    %v243 = vcombine.low %v234, %v241
    %v245 = vunpack.c.l.s4 1966171168
    %v246 = vunpack.c.0.s8 %v245
    %v247 = vlaneseq
    %v248 = vshrl.u32 %v247, 7
    %v249 = vsub.s32 %v246, %v248
    %v250 = vrot.slane %v242, %v249
    %v252 = vunpack.c.l.s4 1966171168
    %v253 = vunpack.c.0.s8 %v252
    %v254 = vlaneseq
    %v255 = vshrl.u32 %v254, 7
    %v256 = vsub.s32 %v253, %v255
    %v257 = vrot.slane %v243, %v256
    %v258 = vcombine.low %v250, %v257
    %260 = vst [vmem:[#allocation8] sm:$0xff] %v258
    // Predicated region
    $region26: #{tpu_custom_call.1} parent=1 // pred_check
      _
    $region27: #{tpu_custom_call.1} parent=1 // pred_check_branch
      %262 = sbr.rel (0) target = $region29
    $region28: #{tpu_custom_call.1} parent=1 // pred_region
      %s264 = ssub.s32 128, 128
      %265 = vsyncadd [#allocation4], %s264
      %s267 = sshll.u32 [#allocation8], 4
      %s268 = int_to_ptr.vmem [resolvable:$true] %s267
      %270 = dma.vmem_to_hbm [thread:$0]  %s268, 128, %s3, [#allocation4]
    $region29: #{tpu_custom_call.1} parent=1 // pred_fallthru
      _
    // Predicated region
    $region30: #{tpu_custom_call.1} parent=1 // pred_check
      _
    $region31: #{tpu_custom_call.1} parent=1 // pred_check_branch
      %272 = sbr.rel (0) target = $region33
    $region32: #{tpu_custom_call.1} parent=1 // pred_region
      %273 = dma.done [#allocation4], 128
    $region33: #{tpu_custom_call.1} parent=1 // pred_fallthru
      _
    %274 = vsyncpa [#allocation3], 1
    %275 = vsyncpa [#allocation6], 1
    %276 = vsyncpa [#allocation4], 1

</llo_original>
